<compile_context>
chip_gen: v7x
topology: tpu7x:2x2x1
jax: 0.10.0
libtpu: 0.0.40
codegen_flags: <defaults>
</compile_context>

<pallas_src>
import jax
import jax.numpy as jnp
from jax import lax
from jax.experimental import pallas as pl
from jax.experimental.pallas import tpu as pltpu

_K = 256          # fixed by the module spec: weight = torch.ones(256)
_TM_MAX = 4096    # rows per grid step: 4096*256*4 B = 4 MiB input block
_CHUNK = 128      # rows per inner compute step (32 vregs live -> no spill)


def _kernel(bias_ref, x_ref, o_ref):
    b = bias_ref[0]                                     # scalar from SMEM
    tm = x_ref.shape[0]

    def do_rows(r0, rows):
        x = x_ref[pl.ds(r0, rows), :]                   # (rows, 256) f32
        # Fold the two 128-lane halves on the VPU, then one 128-lane XLU reduce.
        half = x[:, :128] + x[:, 128:]                  # (rows, 128)
        s = jnp.sum(half, axis=-1, keepdims=True) + b   # (rows, 1)
        v = jnp.clip(s, 0.0, 6.0)
        o_ref[pl.ds(r0, rows), :] = (v + 3.0) * 6.0

    n_full = tm // _CHUNK
    if n_full > 0:
        def body(c, carry):
            do_rows(pl.multiple_of(c * _CHUNK, _CHUNK), _CHUNK)
            return carry
        lax.fori_loop(0, n_full, body, 0)
    rem = tm - n_full * _CHUNK                          # static remainder (< _CHUNK)
    if rem > 0:
        do_rows(n_full * _CHUNK, rem)


def _pick_tm(m):
    """Rows per grid step: multiple of 8, <= m, <= _TM_MAX; >=2 blocks for mid M."""
    if m <= 1024:
        return max(8, (m // 8) * 8)
    # Aim for at least 2 grid steps (keeps both v7x TensorCores busy), cap at 4 MiB.
    target = (((m + 1) // 2) + 7) // 8 * 8
    return min(_TM_MAX, target, (m // 8) * 8)


def model_forward(x, bias1):
    """x: (..., 256) float32, bias1: (1,) float32 -> (...,) float32."""
    *lead, k = x.shape
    assert k == _K, f"module contracts against ones({_K}); got K={k}"
    x = x.astype(jnp.float32)
    b = jnp.asarray(bias1, dtype=jnp.float32).reshape(1)

    m = 1
    for d in lead:
        m *= d
    x2 = x.reshape(m, _K)                               # free view (contiguous)

    m_arr = m
    if m < 8:                                           # degenerate tiny batch only
        x2 = jnp.pad(x2, ((0, 8 - m), (0, 0)))
        m_arr = 8

    tm = _pick_tm(m_arr)
    grid = (pl.cdiv(m_arr, tm),)                        # ragged tail -> partial block
    rows_out = grid[0] * tm                             # output fully block-covered

    out = pl.pallas_call(
        _kernel,
        out_shape=jax.ShapeDtypeStruct((rows_out, 1), jnp.float32),
        grid_spec=pltpu.PrefetchScalarGridSpec(
            num_scalar_prefetch=0,
            grid=grid,
            in_specs=[
                pl.BlockSpec(memory_space=pltpu.SMEM),        # bias1 scalar
                pl.BlockSpec((tm, _K), lambda i: (i, 0)),     # (tm, 256) row tile
            ],
            out_specs=pl.BlockSpec((tm, 1), lambda i: (i, 0)),
        ),
        compiler_params=pltpu.CompilerParams(
            # Independent output blocks -> shard across TCs on v7x megacore.
            dimension_semantics=("parallel",)),
    )(b, x2)

    y = out[:m, 0]                                      # drop tail garbage rows
    return y.reshape(tuple(lead))


if __name__ == "__main__":
    key = jax.random.PRNGKey(0)
    kx, kb, kx2 = jax.random.split(key, 3)

    # torch.Tensor(1) is uninitialized; pick a deterministic value for bias1.
    bias1 = jax.random.normal(kb, (1,), dtype=jnp.float32)
    # bias2 exists in the module but is unused in forward.

    def ref_fn(x):
        return (jnp.clip(jnp.sum(x, axis=-1) + bias1[0], 0.0, 6.0) + 3.0) * 6.0

    # Small shape consistent with the module (last dim must be 256).
    M, K = 8, _K
    x = jax.random.normal(kx, (M, K), dtype=jnp.float32)
    y = model_forward(x, bias1)
    jax.block_until_ready(y)
    assert y.shape == (M,)
    assert jnp.allclose(y, ref_fn(x), atol=1e-4, rtol=1e-4)

    # Second check: multi-block grid + ragged-M partial final block (no pad).
    M2 = 1037
    x2 = jax.random.normal(kx2, (M2, K), dtype=jnp.float32)
    y2 = model_forward(x2, bias1)
    jax.block_until_ready(y2)
    assert y2.shape == (M2,)
    assert jnp.allclose(y2, ref_fn(x2), atol=1e-4, rtol=1e-4)

    print("KERNEL_OK")
</pallas_src>

<mosaic_0001>
module attributes {stable_mosaic.version = 11 : i64} {
  func.func @_kernel(%arg0: i32, %arg1: memref<1xf32, #tpu.memory_space<smem>>, %arg2: memref<8x256xf32, #tpu.memory_space<vmem>>, %arg3: memref<8x1xf32, #tpu.memory_space<vmem>>) attributes {dimension_semantics = [#tpu.dimension_semantics<parallel>], iteration_bounds = array<i64: 1>, scalar_prefetch = 0 : i64, scratch_operands = 0 : i64, tpu.core_type = #tpu.core_type<tc>, window_params = [{transform_indices = @transform_0, window_bounds = array<i64: 1>}, {transform_indices = @transform_1, window_bounds = array<i64: 8, 256>}, {transform_indices = @transform_2, window_bounds = array<i64: 8, 1>}]} {
    %c0 = arith.constant 0 : index
    %0 = memref.load %arg1[%c0] : memref<1xf32, #tpu.memory_space<smem>>
    %c0_0 = arith.constant 0 : index
    %c0_1 = arith.constant 0 : index
    %1 = vector.load %arg2[%c0_0, %c0_1] : memref<8x256xf32, #tpu.memory_space<vmem>>, vector<8x256xf32>
    %2 = vector.extract_strided_slice %1 {offsets = [0, 0], sizes = [8, 128], strides = [1, 1]} : vector<8x256xf32> to vector<8x128xf32>
    %3 = vector.extract_strided_slice %1 {offsets = [0, 128], sizes = [8, 128], strides = [1, 1]} : vector<8x256xf32> to vector<8x128xf32>
    %4 = arith.addf %2, %3 : vector<8x128xf32>
    %cst = arith.constant dense<0.000000e+00> : vector<8xf32>
    %5 = vector.multi_reduction <add>, %4, %cst [1] : vector<8x128xf32> to vector<8xf32>
    %6 = vector.shape_cast %5 : vector<8xf32> to vector<8x1xf32>
    %7 = vector.broadcast %0 : f32 to vector<8x1xf32>
    %8 = arith.addf %6, %7 : vector<8x1xf32>
    %cst_2 = arith.constant 0.000000e+00 : f32
    %cst_3 = arith.constant 6.000000e+00 : f32
    %9 = vector.broadcast %cst_2 : f32 to vector<8x1xf32>
    %10 = arith.maximumf %9, %8 : vector<8x1xf32>
    %11 = vector.broadcast %cst_3 : f32 to vector<8x1xf32>
    %12 = arith.minimumf %11, %10 : vector<8x1xf32>
    %cst_4 = arith.constant 3.000000e+00 : f32
    %13 = vector.broadcast %cst_4 : f32 to vector<8x1xf32>
    %14 = arith.addf %12, %13 : vector<8x1xf32>
    %cst_5 = arith.constant 6.000000e+00 : f32
    %15 = vector.broadcast %cst_5 : f32 to vector<8x1xf32>
    %16 = arith.mulf %14, %15 : vector<8x1xf32>
    %c0_6 = arith.constant 0 : index
    %c0_7 = arith.constant 0 : index
    %17 = vector.load %arg3[%c0_6, %c0_7] : memref<8x1xf32, #tpu.memory_space<vmem>>, vector<8x1xf32>
    tpu.vector_store %arg3[%c0_6, %c0_7], %16 {strides = array<i32>} : memref<8x1xf32, #tpu.memory_space<vmem>>, vector<8x1xf32>,
    return
  }
  func.func @transform_0(%arg0: i32) -> i32 {
    %c0_i32 = arith.constant 0 : i32
    %c0_i32_0 = arith.constant 0 : i32
    return %c0_i32 : i32
  }
  func.func @transform_1(%arg0: i32) -> (i32, i32) {
    %c0_i32 = arith.constant 0 : i32
    %c0_i32_0 = arith.constant 0 : i32
    return %arg0, %c0_i32 : i32, i32
  }
  func.func @transform_2(%arg0: i32) -> (i32, i32) {
    %c0_i32 = arith.constant 0 : i32
    %c0_i32_0 = arith.constant 0 : i32
    return %arg0, %c0_i32 : i32, i32
  }
}

</mosaic_0001>

<llo_original>
// kernel: tpu_custom_call.1
$region0: #{tpu_custom_call.1}
  #allocation0 [shape = 'u32[]', space=smem, size = 0x4, offset = 0x4, fixed_abs, tag = 'smem constant byte address 0x4 - core index']
  #allocation1 [shape = 'u32[144,128]{1,0:T(1,128)}', space=vmem, size = 0x12000, scoped, tag = 'internal scratch']
  #allocation2 [shape = 'f32[1]{0:T(128)S(6)}', space=smem, size = 0x200, scoped, tag = 'scoped memory for tpu_custom_call.1']
  %s0 = inlined_call_operand.<no memory space> [shape: f32[1], index: 0, kind: input, shape index: {}]
  %s1 = inlined_call_operand.hbm [shape: f32[8,256], index: 1, kind: input, shape index: {}]
  %s2 = inlined_call_operand.vmem [shape: f32[8,1], index: 2, kind: output, shape index: {}]
  %s3 = sld [smem:[#allocation0]]
  $region22: #{tpu_custom_call.1} parent=0
    _
  %s5 = ssub.s32 1, %s3
  %s6 = scalar_select 0, %s5, %s3
  %7 = sst [smem:[#allocation2]] %s0
  $region1: #{tpu_custom_call.1} parent=0
    #allocation3 [shape = 'u8[8192]{0}', space=vmem, size = 0x2000, scoped, tag = 'input window, operand 1, single buffered']
    #allocation4 [shape = 's32[1]{0}', space=sflag, size = 0x4, scoped, tag = 'scoped memory for tpu_custom_call.1']
    %8 = vsyncpa [#allocation4], 0
    // Predicated region
    $region2: #{tpu_custom_call.1} parent=1 // pred_check
      _
    $region3: #{tpu_custom_call.1} parent=1 // pred_check_branch
      %10 = sbr.rel (0) target = $region5
    $region4: #{tpu_custom_call.1} parent=1 // pred_region
      _
    $region5: #{tpu_custom_call.1} parent=1 // pred_fallthru
      _
    // Predicated region
    $region6: #{tpu_custom_call.1} parent=1 // pred_check
      _
    $region7: #{tpu_custom_call.1} parent=1 // pred_check_branch
      %12 = sbr.rel (0) target = $region9
    $region8: #{tpu_custom_call.1} parent=1 // pred_region
      %s14 = ssub.s32 256, 256
      %15 = vsyncadd [#allocation4], %s14
      %s17 = sshll.u32 [#allocation3], 4
      %s18 = int_to_ptr.vmem [resolvable:$true] %s17
      %20 = dma.hbm_to_vmem [thread:$0]  %s1, 256, %s18, [#allocation4]
    $region9: #{tpu_custom_call.1} parent=1 // pred_fallthru
      _
    // Predicated region
    $region10: #{tpu_custom_call.1} parent=1 // pred_check
      _
    $region11: #{tpu_custom_call.1} parent=1 // pred_check_branch
      %22 = sbr.rel (0) target = $region13
    $region12: #{tpu_custom_call.1} parent=1 // pred_region
      %23 = dma.done [#allocation4], 256
    $region13: #{tpu_custom_call.1} parent=1 // pred_fallthru
      _
    %s24 = sld [smem:[#allocation2]]
    %v25 = vld [vmem:[#allocation3] sm:$0xff]
    %v26 = vld [vmem:[#allocation3 + $0x8] sm:$0xff]
    %v27 = vadd.f32 %v25, %v26
    %28 = vadd.xlane.f32.xlu0 %v27
    %v29 = vpop.xlane.xlu0 %28
    %v30 = vstv %s24
    %v31 = vadd.f32 %v29, %v30
    %v32 = vmax.f32 %v31, 0.0
    %v33 = vmin.f32 %v32, 6.0
    %v34 = vadd.f32 %v33, 3.0
    %v35 = vmul.f32 %v34, 6.0
    %vm36 = vcmask 7168
    %37 = vst.msk [vmem:[%s2] sm:$0xff] %vm36, %v35
    // Predicated region
    $region14: #{tpu_custom_call.1} parent=1 // pred_check
      _
    $region15: #{tpu_custom_call.1} parent=1 // pred_check_branch
      %39 = sbr.rel (0) target = $region17
    $region16: #{tpu_custom_call.1} parent=1 // pred_region
      _
    $region17: #{tpu_custom_call.1} parent=1 // pred_fallthru
      _
    // Predicated region
    $region18: #{tpu_custom_call.1} parent=1 // pred_check
      _
    $region19: #{tpu_custom_call.1} parent=1 // pred_check_branch
      %41 = sbr.rel (0) target = $region21
    $region20: #{tpu_custom_call.1} parent=1 // pred_region
      _
    $region21: #{tpu_custom_call.1} parent=1 // pred_fallthru
      _
    %42 = vsyncpa [#allocation4], 1

</llo_original>
